<compile_context>
chip_gen: v7x
topology: tpu7x:2x2x1
jax: 0.10.0
libtpu: 0.0.40
codegen_flags: <defaults>
</compile_context>

<pallas_src>
import math

import jax
import jax.numpy as jnp
from jax import lax
from jax.experimental import pallas as pl
from jax.experimental.pallas import tpu as pltpu


# ----------------------------------------------------------------------------
# Kernel
# ----------------------------------------------------------------------------
def _biasfree_layernorm_kernel(x_ref, w_ref, o_ref):
    """Bias-free LayerNorm over the last (lane) axis.

    x_ref: (TM, C)  row tile of the flattened input
    w_ref: (1,  C)  scale (broadcast over rows)
    o_ref: (TM, C)  output tile
    """
    x = x_ref[...].astype(jnp.float32)                       # (TM, C), f32 compute
    c = x.shape[-1]
    inv_c = jnp.float32(1.0 / c)

    # One-pass moments: the two XLU reductions and the squaring can overlap.
    s1 = jnp.sum(x, axis=-1, keepdims=True)                  # sum(x)
    s2 = jnp.sum(x * x, axis=-1, keepdims=True)              # sum(x^2)
    mean = s1 * inv_c
    var = jnp.maximum(s2 * inv_c - mean * mean, 0.0)         # ddof=0, clamp cancellation

    inv = lax.rsqrt(var + 1e-5)                              # EUP rsqrt (free slot)
    w = w_ref[...].astype(jnp.float32)                       # (1, C)

    # NOTE: torch scales the ORIGINAL x (not mean-centered) — bias-free LN.
    o_ref[...] = (x * inv * w).astype(o_ref.dtype)


# ----------------------------------------------------------------------------
# Wrapper
# ----------------------------------------------------------------------------
def biasfree_layernorm(x, weight, *, target_tile_bytes=2 * 1024 * 1024):
    """Applies BiasFree_LayerNorm over the last dimension of `x`.

    x:      (..., C)
    weight: (C,)
    """
    orig_shape = x.shape
    C = orig_shape[-1]
    M = math.prod(orig_shape[:-1]) if len(orig_shape) > 1 else 1
    x2 = x.reshape(M, C)

    itemsize = x2.dtype.itemsize
    # Sublane packing: 8 for f32, 16 for bf16, 32 for int8/fp8.
    pack = max(8, 32 // itemsize)

    # Row tile: target ~target_tile_bytes of input per grid step so DMA time
    # dominates the ~0.35 us fixed per-step cost; keep >=4 steps when possible
    # (software pipelining + even megacore split on v7x).
    bytes_per_row = C * itemsize
    tm = max(pack, target_tile_bytes // bytes_per_row)
    if M >= 4 * pack:
        tm = min(tm, M // 4)
    tm = max(pack, (tm // pack) * pack)
    if tm >= M:
        tm = M                      # full-extent block is always layout-legal

    grid = (pl.cdiv(M, tm),)        # partial last block -> masked writeback

    # VMEM budget: double-buffered input + output tiles, f32 intermediates,
    # weight, plus headroom. Well under scoped limits on v5e/v6e/v7x.
    tile_bytes = tm * C * itemsize
    w_bytes = C * weight.dtype.itemsize
    vmem_bytes = 6 * tile_bytes + 4 * w_bytes + (2 << 20)
    vmem_bytes = int(min(max(vmem_bytes, 4 << 20), 48 << 20))

    w2 = weight.reshape(1, C)       # cast happens inside the kernel

    out = pl.pallas_call(
        _biasfree_layernorm_kernel,
        out_shape=jax.ShapeDtypeStruct((M, C), x.dtype),
        grid_spec=pltpu.PrefetchScalarGridSpec(
            num_scalar_prefetch=0,
            grid=grid,
            in_specs=[
                pl.BlockSpec((tm, C), lambda i: (i, 0)),
                pl.BlockSpec((1, C), lambda i: (0, 0)),   # constant block: DMA'd once
            ],
            out_specs=pl.BlockSpec((tm, C), lambda i: (i, 0)),
        ),
        compiler_params=pltpu.CompilerParams(
            dimension_semantics=("parallel",),
            vmem_limit_bytes=vmem_bytes,
        ),
    )(x2, w2)

    return out.reshape(orig_shape)


# ----------------------------------------------------------------------------
# Pure-JAX reference (torch semantics)
# ----------------------------------------------------------------------------
def biasfree_layernorm_ref(x, weight):
    var = jnp.var(x, axis=-1, keepdims=True)          # ddof=0 == unbiased=False
    return x / jnp.sqrt(var + 1e-5) * weight


# ----------------------------------------------------------------------------
if __name__ == "__main__":
    key = jax.random.PRNGKey(0)
    kx1, kx2, kw = jax.random.split(key, 3)

    # Shapes consistent with the module's use in the arch: tokens = H*W on the
    # row axis, channels (normalized_shape) on the lane axis.
    B, HW, C = 2, 16 * 16, 48
    x1 = jax.random.normal(kx1, (B, HW, C), jnp.float32)
    weight = 1.0 + 0.1 * jax.random.normal(kw, (C,), jnp.float32)

    fn = jax.jit(biasfree_layernorm)

    y1 = fn(x1, weight)
    jax.block_until_ready(y1)
    if not jnp.allclose(y1, biasfree_layernorm_ref(x1, weight), atol=1e-4, rtol=1e-4):
        raise AssertionError("Pallas BiasFree_LayerNorm mismatch vs reference (case 1)")

    # Ragged row count: exercises the cdiv grid / masked last block (no pad/slice).
    x2 = jax.random.normal(kx2, (2, 250, C), jnp.float32)
    y2 = jax.jit(biasfree_layernorm)(x2, weight)
    jax.block_until_ready(y2)
    if not jnp.allclose(y2, biasfree_layernorm_ref(x2, weight), atol=1e-4, rtol=1e-4):
        raise AssertionError("Pallas BiasFree_LayerNorm mismatch vs reference (case 2)")

    print("KERNEL_OK")
</pallas_src>

<mosaic_0001>
module attributes {stable_mosaic.version = 11 : i64} {
  func.func @_biasfree_layernorm_kernel(%arg0: i32, %arg1: memref<128x48xf32, #tpu.memory_space<vmem>>, %arg2: memref<1x48xf32, #tpu.memory_space<vmem>>, %arg3: memref<128x48xf32, #tpu.memory_space<vmem>>) attributes {dimension_semantics = [#tpu.dimension_semantics<parallel>], iteration_bounds = array<i64: 4>, scalar_prefetch = 0 : i64, scratch_operands = 0 : i64, tpu.core_type = #tpu.core_type<tc>, window_params = [{transform_indices = @transform_0, window_bounds = array<i64: 128, 48>}, {pipeline_mode = #tpu.pipeline_mode<synchronous>, transform_indices = @transform_1, window_bounds = array<i64: 1, 48>}, {transform_indices = @transform_2, window_bounds = array<i64: 128, 48>}]} {
    %c0 = arith.constant 0 : index
    %c0_0 = arith.constant 0 : index
    %0 = vector.load %arg1[%c0, %c0_0] : memref<128x48xf32, #tpu.memory_space<vmem>>, vector<128x48xf32>
    %cst = arith.constant dense<0.000000e+00> : vector<128xf32>
    %1 = vector.multi_reduction <add>, %0, %cst [1] : vector<128x48xf32> to vector<128xf32>
    %2 = vector.shape_cast %1 : vector<128xf32> to vector<128x1xf32>
    %3 = arith.mulf %0, %0 : vector<128x48xf32>
    %cst_1 = arith.constant dense<0.000000e+00> : vector<128xf32>
    %4 = vector.multi_reduction <add>, %3, %cst_1 [1] : vector<128x48xf32> to vector<128xf32>
    %5 = vector.shape_cast %4 : vector<128xf32> to vector<128x1xf32>
    %cst_2 = arith.constant 0.020833334 : f32
    %6 = vector.broadcast %cst_2 : f32 to vector<128x1xf32>
    %7 = arith.mulf %2, %6 : vector<128x1xf32>
    %cst_3 = arith.constant 0.020833334 : f32
    %8 = vector.broadcast %cst_3 : f32 to vector<128x1xf32>
    %9 = arith.mulf %5, %8 : vector<128x1xf32>
    %10 = arith.mulf %7, %7 : vector<128x1xf32>
    %11 = arith.subf %9, %10 : vector<128x1xf32>
    %cst_4 = arith.constant 0.000000e+00 : f32
    %12 = vector.broadcast %cst_4 : f32 to vector<128x1xf32>
    %13 = arith.maximumf %11, %12 : vector<128x1xf32>
    %cst_5 = arith.constant 9.99999974E-6 : f32
    %14 = vector.broadcast %cst_5 : f32 to vector<128x1xf32>
    %15 = arith.addf %13, %14 : vector<128x1xf32>
    %16 = math.rsqrt %15 : vector<128x1xf32>
    %c0_6 = arith.constant 0 : index
    %c0_7 = arith.constant 0 : index
    %17 = vector.load %arg2[%c0_6, %c0_7] : memref<1x48xf32, #tpu.memory_space<vmem>>, vector<1x48xf32>
    %18 = vector.broadcast %16 : vector<128x1xf32> to vector<128x48xf32>
    %19 = arith.mulf %0, %18 : vector<128x48xf32>
    %20 = vector.broadcast %17 : vector<1x48xf32> to vector<128x48xf32>
    %21 = arith.mulf %19, %20 : vector<128x48xf32>
    %c0_8 = arith.constant 0 : index
    %c0_9 = arith.constant 0 : index
    %22 = vector.load %arg3[%c0_8, %c0_9] : memref<128x48xf32, #tpu.memory_space<vmem>>, vector<128x48xf32>
    tpu.vector_store %arg3[%c0_8, %c0_9], %21 {strides = array<i32>} : memref<128x48xf32, #tpu.memory_space<vmem>>, vector<128x48xf32>,
    return
  }
  func.func @transform_0(%arg0: i32) -> (i32, i32) {
    %c0_i32 = arith.constant 0 : i32
    %c0_i32_0 = arith.constant 0 : i32
    return %arg0, %c0_i32 : i32, i32
  }
  func.func @transform_1(%arg0: i32) -> (i32, i32) {
    %c0_i32 = arith.constant 0 : i32
    %c0_i32_0 = arith.constant 0 : i32
    %c0_i32_1 = arith.constant 0 : i32
    return %c0_i32, %c0_i32_0 : i32, i32
  }
  func.func @transform_2(%arg0: i32) -> (i32, i32) {
    %c0_i32 = arith.constant 0 : i32
    %c0_i32_0 = arith.constant 0 : i32
    return %arg0, %c0_i32 : i32, i32
  }
}

</mosaic_0001>

<llo_original>
// kernel: biasfree_layernorm.1
$region0: #{biasfree_layernorm.1}
  #allocation0 [shape = 'u32[]', space=smem, size = 0x4, offset = 0x4, fixed_abs, tag = 'smem constant byte address 0x4 - core index']
  #allocation1 [shape = 'u32[144,128]{1,0:T(1,128)}', space=vmem, size = 0x12000, scoped, tag = 'internal scratch']
  %s0 = inlined_call_operand.vmem [shape: f32[512,48], index: 0, kind: input, shape index: {}]
  %s1 = inlined_call_operand.vmem [shape: f32[1,48], index: 1, kind: input, shape index: {}]
  %s2 = inlined_call_operand.vmem [shape: f32[512,48], index: 2, kind: output, shape index: {}]
  %s3 = sld [smem:[#allocation0]]
  $region41: #{biasfree_layernorm.1} parent=0
    _
  %s5 = ssub.s32 1, %s3
  %s6 = scalar_select 0, %s5, %s3
  loop: start=0, step=1, limit=6
  $region2: #{biasfree_layernorm.1} parent=0 // loop_pre_header
    _
  $region3: #{biasfree_layernorm.1} parent=0 // loop_header
    %s8 = sphi 0, %s12
    %p9 = scmp.ge.s32.totalorder %s8, 6
    %s18 = sphi 0, %s20
    %s21 = sphi 0, %s18
    %s22 = sphi 0, %s21
    %s38 = sphi 0, %s22
    %s42 = sphi 0, %s42
    %s44 = sphi 0, %s42
    %s45 = sphi 0, %s44
    %s59 = sphi 0, %s45
    %s65 = sphi 0, %s67
    %s68 = sphi 0, %s65
    %s69 = sphi 0, %s68
    %s85 = sphi 0, %s69
  $region4: #{biasfree_layernorm.1} parent=0 // loop_header_branch
    %11 = sbr.rel (%p9) target = $region8
  $region5: #{biasfree_layernorm.1} parent=0 // loop_body
    %s13 = ssub.s32 %s8, 1
    %s14 = ssub.s32 %s8, 2
    %s15 = sadd.s32 %s8, 1
    %s16 = ssub.s32 %s8, %s15
    %p17 = scmp.eq.s32.totalorder %s16, 0
    %s19 = sadd.s32 %s18, 1
    %s20 = scalar_select %p17, %s18, %s19
    %p23 = pneg %p17
    %p24 = scmp.eq.s32.totalorder %s8, 3
    %p25 = por %p23, %p24
    %p26 = scmp.ne.s32.totalorder %s18, %s21
    %p27 = scmp.eq.s32.totalorder %s8, 0
    %p28 = por %p26, %p27
    %p29 = scmp.ne.s32.totalorder %s18, %s21
    %p30 = scmp.eq.s32.totalorder %s13, 3
    %p31 = por %p29, %p30
    %p32 = scmp.ne.s32.totalorder %s21, %s22
    %p33 = scmp.eq.s32.totalorder %s13, 0
    %p34 = por %p32, %p33
    %p35 = scmp.ne.s32.totalorder %s21, %s22
    %p36 = scmp.eq.s32.totalorder %s14, 3
    %p37 = por %p35, %p36
    %p39 = scmp.ne.s32.totalorder %s22, %s38
    %p40 = scmp.eq.s32.totalorder %s14, 0
    %p41 = por %p39, %p40
    %s43 = sadd.s32 %s42, 1
    %p46 = scmp.eq.s32.totalorder %s8, 3
    %p47 = scmp.ne.s32.totalorder %s42, %s44
    %p48 = scmp.eq.s32.totalorder %s8, 0
    %p49 = por %p47, %p48
    %p50 = scmp.ne.s32.totalorder %s42, %s44
    %p51 = scmp.eq.s32.totalorder %s13, 3
    %p52 = por %p50, %p51
    %p53 = scmp.ne.s32.totalorder %s44, %s45
    %p54 = scmp.eq.s32.totalorder %s13, 0
    %p55 = por %p53, %p54
    %p56 = scmp.ne.s32.totalorder %s44, %s45
    %p57 = scmp.eq.s32.totalorder %s14, 3
    %p58 = por %p56, %p57
    %p60 = scmp.ne.s32.totalorder %s45, %s59
    %p61 = scmp.eq.s32.totalorder %s14, 0
    %p62 = por %p60, %p61
    %s63 = ssub.s32 %s8, %s15
    %p64 = scmp.eq.s32.totalorder %s63, 0
    %s66 = sadd.s32 %s65, 1
    %s67 = scalar_select %p64, %s65, %s66
    %p70 = pneg %p64
    %p71 = scmp.eq.s32.totalorder %s8, 3
    %p72 = por %p70, %p71
    %p73 = scmp.ne.s32.totalorder %s65, %s68
    %p74 = scmp.eq.s32.totalorder %s8, 0
    %p75 = por %p73, %p74
    %p76 = scmp.ne.s32.totalorder %s65, %s68
    %p77 = scmp.eq.s32.totalorder %s13, 3
    %p78 = por %p76, %p77
    %p79 = scmp.ne.s32.totalorder %s68, %s69
    %p80 = scmp.eq.s32.totalorder %s13, 0
    %p81 = por %p79, %p80
    %p82 = scmp.ne.s32.totalorder %s68, %s69
    %p83 = scmp.eq.s32.totalorder %s14, 3
    %p84 = por %p82, %p83
    %p86 = scmp.ne.s32.totalorder %s69, %s85
    %p87 = scmp.eq.s32.totalorder %s14, 0
    %p88 = por %p86, %p87
    %p89 = scmp.le.s32.totalorder 1, %s8
    %p90 = scmp.lt.s32.totalorder %s8, 5
    %p91 = pnand %p89, %p90
    %p92 = pneg %p91
    // Predicated region
    $region9: #{biasfree_layernorm.1} parent=5 // pred_check
      _
    $region10: #{biasfree_layernorm.1} parent=5 // pred_check_branch
      %94 = sbr.rel (%p91) target = $region12
    $region11: #{biasfree_layernorm.1} parent=5 // pred_region
      %s95 = ssub.s32 %s8, 1
      // Predicated region
      $region13: #{biasfree_layernorm.1} parent=11 // pred_check
        %p96 = pneg %p55
      $region14: #{biasfree_layernorm.1} parent=11 // pred_check_branch
        %98 = sbr.rel (%p96) target = $region16
      $region15: #{biasfree_layernorm.1} parent=11 // pred_region
        _
      $region16: #{biasfree_layernorm.1} parent=11 // pred_fallthru
        _
    $region12: #{biasfree_layernorm.1} parent=5 // pred_fallthru
      _
    %p99 = scmp.lt.s32.totalorder %s8, 4
    // Predicated region
    $region17: #{biasfree_layernorm.1} parent=5 // pred_check
      %p100 = pneg %p99
    $region18: #{biasfree_layernorm.1} parent=5 // pred_check_branch
      %102 = sbr.rel (%p100) target = $region20
    $region19: #{biasfree_layernorm.1} parent=5 // pred_region
      // Predicated region
      $region21: #{biasfree_layernorm.1} parent=19 // pred_check
        %p103 = pneg %p28
      $region22: #{biasfree_layernorm.1} parent=19 // pred_check_branch
        %105 = sbr.rel (%p103) target = $region24
      $region23: #{biasfree_layernorm.1} parent=19 // pred_region
        %s106 = smul.u32 16, %s8
        %p107 = scmp.lt.s32.totalorder %s106, 63
        %s108 = scalar_select %p107, %s106, 63
        %s109 = smul.addr %s108, 8
        %s110 = scalar_lea.vmem %s0, %s109
        %s111 = smul.u32 16, %s8
      $region24: #{biasfree_layernorm.1} parent=19 // pred_fallthru
        _
    $region20: #{biasfree_layernorm.1} parent=5 // pred_fallthru
      _
    %p112 = scmp.le.s32.totalorder 1, %s8
    %p113 = scmp.lt.s32.totalorder %s8, 5
    %p114 = pnand %p112, %p113
    %p115 = pneg %p114
    // Predicated region
    $region25: #{biasfree_layernorm.1} parent=5 // pred_check
      _
    $region26: #{biasfree_layernorm.1} parent=5 // pred_check_branch
      %117 = sbr.rel (%p114) target = $region28
    $region27: #{biasfree_layernorm.1} parent=5 // pred_region
      %s118 = ssub.s32 %s8, 1
      %s119 = smul.u32 16, %s13
      %p120 = scmp.lt.s32.totalorder %s119, 63
      %s121 = scalar_select %p120, %s119, 63
      %s122 = smul.addr %s121, 8
      %s123 = scalar_lea.vmem %s0, %s122
      %p124 = pneg %p34
      %p125 = pneg %p31
      %p126 = pneg %p55
      %p127 = pneg %p52
      %p128 = pneg %p81
      %p129 = pneg %p78
      %s130 = smul.u32 16, %s13
      %p131 = scmp.lt.s32.totalorder %s130, 63
      %s132 = scalar_select %p131, %s130, 63
      %s133 = smul.addr %s132, 8
      %s134 = scalar_lea.vmem %s2, %s133
      %s135 = smul.u32 16, %s13
      %p136 = scmp.lt.s32.totalorder %s135, 63
      %s137 = scalar_select %p136, %s135, 63
      %s138 = smul.addr %s137, 8
      %s139 = scalar_lea.vmem %s0, %s138
      %s140 = smul.u32 16, %s13
      %s141 = smul.u32 16, %s13
      %p142 = scmp.lt.s32.totalorder %s141, 63
      %s143 = scalar_select %p142, %s141, 63
      %s144 = smul.addr %s143, 8
      %s145 = scalar_lea.vmem %s2, %s144
      %s146 = smul.u32 16, %s13
      %v147 = vld [vmem:[%s139] sm:$0xff]
      %v148 = vld [vmem:[%s139 + $0x8] sm:$0xff]
      %v149 = vld [vmem:[%s139 + $0x10] sm:$0xff]
      %v150 = vld [vmem:[%s139 + $0x18] sm:$0xff]
      %v151 = vld [vmem:[%s139 + $0x20] sm:$0xff]
      %v152 = vld [vmem:[%s139 + $0x28] sm:$0xff]
      %v153 = vld [vmem:[%s139 + $0x30] sm:$0xff]
      %v154 = vld [vmem:[%s139 + $0x38] sm:$0xff]
      %v155 = vld [vmem:[%s139 + $0x40] sm:$0xff]
      %v156 = vld [vmem:[%s139 + $0x48] sm:$0xff]
      %v157 = vld [vmem:[%s139 + $0x50] sm:$0xff]
      %v158 = vld [vmem:[%s139 + $0x58] sm:$0xff]
      %v159 = vld [vmem:[%s139 + $0x60] sm:$0xff]
      %v160 = vld [vmem:[%s139 + $0x68] sm:$0xff]
      %v161 = vld [vmem:[%s139 + $0x70] sm:$0xff]
      %v162 = vld [vmem:[%s139 + $0x78] sm:$0xff]
      %vm163 = vcmask 392192
      %v164 = vsel %vm163, %v147, 0.0
      %165 = vadd.xlane.f32.xlu0 %v164
      %v166 = vpop.xlane.xlu0 %165
      %v167 = vsel %vm163, %v148, 0.0
      %168 = vadd.xlane.f32.xlu0 %v167
      %v169 = vpop.xlane.xlu0 %168
      %v170 = vsel %vm163, %v149, 0.0
      %171 = vadd.xlane.f32.xlu0 %v170
      %v172 = vpop.xlane.xlu0 %171
      %v173 = vsel %vm163, %v150, 0.0
      %174 = vadd.xlane.f32.xlu0 %v173
      %v175 = vpop.xlane.xlu0 %174
      %v176 = vsel %vm163, %v151, 0.0
      %177 = vadd.xlane.f32.xlu0 %v176
      %v178 = vpop.xlane.xlu0 %177
      %v179 = vsel %vm163, %v152, 0.0
      %180 = vadd.xlane.f32.xlu0 %v179
      %v181 = vpop.xlane.xlu0 %180
      %v182 = vsel %vm163, %v153, 0.0
      %183 = vadd.xlane.f32.xlu0 %v182
      %v184 = vpop.xlane.xlu0 %183
      %v185 = vsel %vm163, %v154, 0.0
      %186 = vadd.xlane.f32.xlu0 %v185
      %v187 = vpop.xlane.xlu0 %186
      %v188 = vsel %vm163, %v155, 0.0
      %189 = vadd.xlane.f32.xlu0 %v188
      %v190 = vpop.xlane.xlu0 %189
      %v191 = vsel %vm163, %v156, 0.0
      %192 = vadd.xlane.f32.xlu0 %v191
      %v193 = vpop.xlane.xlu0 %192
      %v194 = vsel %vm163, %v157, 0.0
      %195 = vadd.xlane.f32.xlu0 %v194
      %v196 = vpop.xlane.xlu0 %195
      %v197 = vsel %vm163, %v158, 0.0
      %198 = vadd.xlane.f32.xlu0 %v197
      %v199 = vpop.xlane.xlu0 %198
      %v200 = vsel %vm163, %v159, 0.0
      %201 = vadd.xlane.f32.xlu0 %v200
      %v202 = vpop.xlane.xlu0 %201
      %v203 = vsel %vm163, %v160, 0.0
      %204 = vadd.xlane.f32.xlu0 %v203
      %v205 = vpop.xlane.xlu0 %204
      %v206 = vsel %vm163, %v161, 0.0
      %207 = vadd.xlane.f32.xlu0 %v206
      %v208 = vpop.xlane.xlu0 %207
      %v209 = vsel %vm163, %v162, 0.0
      %210 = vadd.xlane.f32.xlu0 %v209
      %v211 = vpop.xlane.xlu0 %210
      %v212 = vmul.f32 %v147, %v147
      %v213 = vmul.f32 %v148, %v148
      %v214 = vmul.f32 %v149, %v149
      %v215 = vmul.f32 %v150, %v150
      %v216 = vmul.f32 %v151, %v151
      %v217 = vmul.f32 %v152, %v152
      %v218 = vmul.f32 %v153, %v153
      %v219 = vmul.f32 %v154, %v154
      %v220 = vmul.f32 %v155, %v155
      %v221 = vmul.f32 %v156, %v156
      %v222 = vmul.f32 %v157, %v157
      %v223 = vmul.f32 %v158, %v158
      %v224 = vmul.f32 %v159, %v159
      %v225 = vmul.f32 %v160, %v160
      %v226 = vmul.f32 %v161, %v161
      %v227 = vmul.f32 %v162, %v162
      %v228 = vsel %vm163, %v212, 0.0
      %229 = vadd.xlane.f32.xlu0 %v228
      %v230 = vpop.xlane.xlu0 %229
      %v231 = vsel %vm163, %v213, 0.0
      %232 = vadd.xlane.f32.xlu0 %v231
      %v233 = vpop.xlane.xlu0 %232
      %v234 = vsel %vm163, %v214, 0.0
      %235 = vadd.xlane.f32.xlu0 %v234
      %v236 = vpop.xlane.xlu0 %235
      %v237 = vsel %vm163, %v215, 0.0
      %238 = vadd.xlane.f32.xlu0 %v237
      %v239 = vpop.xlane.xlu0 %238
      %v240 = vsel %vm163, %v216, 0.0
      %241 = vadd.xlane.f32.xlu0 %v240
      %v242 = vpop.xlane.xlu0 %241
      %v243 = vsel %vm163, %v217, 0.0
      %244 = vadd.xlane.f32.xlu0 %v243
      %v245 = vpop.xlane.xlu0 %244
      %v246 = vsel %vm163, %v218, 0.0
      %247 = vadd.xlane.f32.xlu0 %v246
      %v248 = vpop.xlane.xlu0 %247
      %v249 = vsel %vm163, %v219, 0.0
      %250 = vadd.xlane.f32.xlu0 %v249
      %v251 = vpop.xlane.xlu0 %250
      %v252 = vsel %vm163, %v220, 0.0
      %253 = vadd.xlane.f32.xlu0 %v252
      %v254 = vpop.xlane.xlu0 %253
      %v255 = vsel %vm163, %v221, 0.0
      %256 = vadd.xlane.f32.xlu0 %v255
      %v257 = vpop.xlane.xlu0 %256
      %v258 = vsel %vm163, %v222, 0.0
      %259 = vadd.xlane.f32.xlu0 %v258
      %v260 = vpop.xlane.xlu0 %259
      %v261 = vsel %vm163, %v223, 0.0
      %262 = vadd.xlane.f32.xlu0 %v261
      %v263 = vpop.xlane.xlu0 %262
      %v264 = vsel %vm163, %v224, 0.0
      %265 = vadd.xlane.f32.xlu0 %v264
      %v266 = vpop.xlane.xlu0 %265
      %v267 = vsel %vm163, %v225, 0.0
      %268 = vadd.xlane.f32.xlu0 %v267
      %v269 = vpop.xlane.xlu0 %268
      %v270 = vsel %vm163, %v226, 0.0
      %271 = vadd.xlane.f32.xlu0 %v270
      %v272 = vpop.xlane.xlu0 %271
      %v273 = vsel %vm163, %v227, 0.0
      %274 = vadd.xlane.f32.xlu0 %v273
      %v275 = vpop.xlane.xlu0 %274
      %v276 = vmul.f32 %v166, 0.020833334
      %v277 = vmul.f32 %v169, 0.020833334
      %v278 = vmul.f32 %v172, 0.020833334
      %v279 = vmul.f32 %v175, 0.020833334
      %v280 = vmul.f32 %v178, 0.020833334
      %v281 = vmul.f32 %v181, 0.020833334
      %v282 = vmul.f32 %v184, 0.020833334
      %v283 = vmul.f32 %v187, 0.020833334
      %v284 = vmul.f32 %v190, 0.020833334
      %v285 = vmul.f32 %v193, 0.020833334
      %v286 = vmul.f32 %v196, 0.020833334
      %v287 = vmul.f32 %v199, 0.020833334
      %v288 = vmul.f32 %v202, 0.020833334
      %v289 = vmul.f32 %v205, 0.020833334
      %v290 = vmul.f32 %v208, 0.020833334
      %v291 = vmul.f32 %v211, 0.020833334
      %v292 = vmul.f32 %v230, 0.020833334
      %v293 = vmul.f32 %v233, 0.020833334
      %v294 = vmul.f32 %v236, 0.020833334
      %v295 = vmul.f32 %v239, 0.020833334
      %v296 = vmul.f32 %v242, 0.020833334
      %v297 = vmul.f32 %v245, 0.020833334
      %v298 = vmul.f32 %v248, 0.020833334
      %v299 = vmul.f32 %v251, 0.020833334
      %v300 = vmul.f32 %v254, 0.020833334
      %v301 = vmul.f32 %v257, 0.020833334
      %v302 = vmul.f32 %v260, 0.020833334
      %v303 = vmul.f32 %v263, 0.020833334
      %v304 = vmul.f32 %v266, 0.020833334
      %v305 = vmul.f32 %v269, 0.020833334
      %v306 = vmul.f32 %v272, 0.020833334
      %v307 = vmul.f32 %v275, 0.020833334
      %v308 = vmul.f32 %v276, %v276
      %v309 = vmul.f32 %v277, %v277
      %v310 = vmul.f32 %v278, %v278
      %v311 = vmul.f32 %v279, %v279
      %v312 = vmul.f32 %v280, %v280
      %v313 = vmul.f32 %v281, %v281
      %v314 = vmul.f32 %v282, %v282
      %v315 = vmul.f32 %v283, %v283
      %v316 = vmul.f32 %v284, %v284
      %v317 = vmul.f32 %v285, %v285
      %v318 = vmul.f32 %v286, %v286
      %v319 = vmul.f32 %v287, %v287
      %v320 = vmul.f32 %v288, %v288
      %v321 = vmul.f32 %v289, %v289
      %v322 = vmul.f32 %v290, %v290
      %v323 = vmul.f32 %v291, %v291
      %v324 = vsub.f32 %v292, %v308
      %v325 = vsub.f32 %v293, %v309
      %v326 = vsub.f32 %v294, %v310
      %v327 = vsub.f32 %v295, %v311
      %v328 = vsub.f32 %v296, %v312
      %v329 = vsub.f32 %v297, %v313
      %v330 = vsub.f32 %v298, %v314
      %v331 = vsub.f32 %v299, %v315
      %v332 = vsub.f32 %v300, %v316
      %v333 = vsub.f32 %v301, %v317
      %v334 = vsub.f32 %v302, %v318
      %v335 = vsub.f32 %v303, %v319
      %v336 = vsub.f32 %v304, %v320
      %v337 = vsub.f32 %v305, %v321
      %v338 = vsub.f32 %v306, %v322
      %v339 = vsub.f32 %v307, %v323
      %v340 = vmax.f32 %v324, 0.0
      %v341 = vmax.f32 %v325, 0.0
      %v342 = vmax.f32 %v326, 0.0
      %v343 = vmax.f32 %v327, 0.0
      %v344 = vmax.f32 %v328, 0.0
      %v345 = vmax.f32 %v329, 0.0
      %v346 = vmax.f32 %v330, 0.0
      %v347 = vmax.f32 %v331, 0.0
      %v348 = vmax.f32 %v332, 0.0
      %v349 = vmax.f32 %v333, 0.0
      %v350 = vmax.f32 %v334, 0.0
      %v351 = vmax.f32 %v335, 0.0
      %v352 = vmax.f32 %v336, 0.0
      %v353 = vmax.f32 %v337, 0.0
      %v354 = vmax.f32 %v338, 0.0
      %v355 = vmax.f32 %v339, 0.0
      %v356 = vadd.f32 %v340, 1e-05
      %v357 = vadd.f32 %v341, 1e-05
      %v358 = vadd.f32 %v342, 1e-05
      %v359 = vadd.f32 %v343, 1e-05
      %v360 = vadd.f32 %v344, 1e-05
      %v361 = vadd.f32 %v345, 1e-05
      %v362 = vadd.f32 %v346, 1e-05
      %v363 = vadd.f32 %v347, 1e-05
      %v364 = vadd.f32 %v348, 1e-05
      %v365 = vadd.f32 %v349, 1e-05
      %v366 = vadd.f32 %v350, 1e-05
      %v367 = vadd.f32 %v351, 1e-05
      %v368 = vadd.f32 %v352, 1e-05
      %v369 = vadd.f32 %v353, 1e-05
      %v370 = vadd.f32 %v354, 1e-05
      %v371 = vadd.f32 %v355, 1e-05
      %v372 = vrsqrt.pop %v356
      %v373 = vrsqrt.pop %v357
      %v374 = vrsqrt.pop %v358
      %v375 = vrsqrt.pop %v359
      %v376 = vrsqrt.pop %v360
      %v377 = vrsqrt.pop %v361
      %v378 = vrsqrt.pop %v362
      %v379 = vrsqrt.pop %v363
      %v380 = vrsqrt.pop %v364
      %v381 = vrsqrt.pop %v365
      %v382 = vrsqrt.pop %v366
      %v383 = vrsqrt.pop %v367
      %v384 = vrsqrt.pop %v368
      %v385 = vrsqrt.pop %v369
      %v386 = vrsqrt.pop %v370
      %v387 = vrsqrt.pop %v371
      %v388 = vld [vmem:[%s1] sm:$0x1]
      %v389 = vmul.f32 %v147, %v372
      %v390 = vmul.f32 %v148, %v373
      %v391 = vmul.f32 %v149, %v374
      %v392 = vmul.f32 %v150, %v375
      %v393 = vmul.f32 %v151, %v376
      %v394 = vmul.f32 %v152, %v377
      %v395 = vmul.f32 %v153, %v378
      %v396 = vmul.f32 %v154, %v379
      %v397 = vmul.f32 %v155, %v380
      %v398 = vmul.f32 %v156, %v381
      %v399 = vmul.f32 %v157, %v382
      %v400 = vmul.f32 %v158, %v383
      %v401 = vmul.f32 %v159, %v384
      %v402 = vmul.f32 %v160, %v385
      %v403 = vmul.f32 %v161, %v386
      %v404 = vmul.f32 %v162, %v387
      %v406 = vlaneseq
      %v407 = vshrl.u32 %v406, 7
      %v408 = vsub.s32 0, %v407
      %v409 = vrot.slane %v388, %v408
      %v411 = vmul.f32 %v389, %v409
      %v412 = vmul.f32 %v390, %v409
      %v413 = vmul.f32 %v391, %v409
      %v414 = vmul.f32 %v392, %v409
      %v415 = vmul.f32 %v393, %v409
      %v416 = vmul.f32 %v394, %v409
      %v417 = vmul.f32 %v395, %v409
      %v418 = vmul.f32 %v396, %v409
      %v419 = vmul.f32 %v397, %v409
      %v420 = vmul.f32 %v398, %v409
      %v421 = vmul.f32 %v399, %v409
      %v422 = vmul.f32 %v400, %v409
      %v423 = vmul.f32 %v401, %v409
      %v424 = vmul.f32 %v402, %v409
      %v425 = vmul.f32 %v403, %v409
      %v426 = vmul.f32 %v404, %v409
      %427 = vst.msk [vmem:[%s145] sm:$0xff] %vm163, %v411
      %428 = vst.msk [vmem:[%s145 + $0x8] sm:$0xff] %vm163, %v412
      %429 = vst.msk [vmem:[%s145 + $0x10] sm:$0xff] %vm163, %v413
      %430 = vst.msk [vmem:[%s145 + $0x18] sm:$0xff] %vm163, %v414
      %431 = vst.msk [vmem:[%s145 + $0x20] sm:$0xff] %vm163, %v415
      %432 = vst.msk [vmem:[%s145 + $0x28] sm:$0xff] %vm163, %v416
      %433 = vst.msk [vmem:[%s145 + $0x30] sm:$0xff] %vm163, %v417
      %434 = vst.msk [vmem:[%s145 + $0x38] sm:$0xff] %vm163, %v418
      %435 = vst.msk [vmem:[%s145 + $0x40] sm:$0xff] %vm163, %v419
      %436 = vst.msk [vmem:[%s145 + $0x48] sm:$0xff] %vm163, %v420
      %437 = vst.msk [vmem:[%s145 + $0x50] sm:$0xff] %vm163, %v421
      %438 = vst.msk [vmem:[%s145 + $0x58] sm:$0xff] %vm163, %v422
      %439 = vst.msk [vmem:[%s145 + $0x60] sm:$0xff] %vm163, %v423
      %440 = vst.msk [vmem:[%s145 + $0x68] sm:$0xff] %vm163, %v424
      %441 = vst.msk [vmem:[%s145 + $0x70] sm:$0xff] %vm163, %v425
      %442 = vst.msk [vmem:[%s145 + $0x78] sm:$0xff] %vm163, %v426
      %s443 = smul.u32 16, %s13
      %p444 = scmp.lt.s32.totalorder %s443, 63
      %s445 = scalar_select %p444, %s443, 63
      %s446 = smul.addr %s445, 8
      %s447 = scalar_lea.vmem %s2, %s446
      // Predicated region
      $region29: #{biasfree_layernorm.1} parent=27 // pred_check
        %p448 = pneg %p78
      $region30: #{biasfree_layernorm.1} parent=27 // pred_check_branch
        %450 = sbr.rel (%p448) target = $region32
      $region31: #{biasfree_layernorm.1} parent=27 // pred_region
        %s451 = smul.u32 16, %s13
      $region32: #{biasfree_layernorm.1} parent=27 // pred_fallthru
        _
    $region28: #{biasfree_layernorm.1} parent=5 // pred_fallthru
      _
    %p452 = scmp.le.s32.totalorder 2, %s8
    // Predicated region
    $region33: #{biasfree_layernorm.1} parent=5 // pred_check
      %p453 = pneg %p452
    $region34: #{biasfree_layernorm.1} parent=5 // pred_check_branch
      %455 = sbr.rel (%p453) target = $region36
    $region35: #{biasfree_layernorm.1} parent=5 // pred_region
      %s456 = ssub.s32 %s8, 2
      // Predicated region
      $region37: #{biasfree_layernorm.1} parent=35 // pred_check
        %p457 = pneg %p84
      $region38: #{biasfree_layernorm.1} parent=35 // pred_check_branch
        %459 = sbr.rel (%p457) target = $region40
      $region39: #{biasfree_layernorm.1} parent=35 // pred_region
        %s460 = smul.u32 16, %s14
        %p461 = scmp.lt.s32.totalorder %s460, 63
        %s462 = scalar_select %p461, %s460, 63
        %s463 = smul.addr %s462, 8
        %s464 = scalar_lea.vmem %s2, %s463
      $region40: #{biasfree_layernorm.1} parent=35 // pred_fallthru
        _
    $region36: #{biasfree_layernorm.1} parent=5 // pred_fallthru
      _
  $region6: #{biasfree_layernorm.1} parent=0 // loop_footer
    %s12 = sadd.s32 1, %s8
  $region7: #{biasfree_layernorm.1} parent=0 // loop_footer_branch
    %7 = sbr.rel target = $region3
  $region8: #{biasfree_layernorm.1} parent=0 // loop_exit
    _

</llo_original>
